<compile_context>
chip_gen: v5e
topology: v5e:2x2
jax: 0.10.0
libtpu: 0.0.40
codegen_flags: <defaults>
</compile_context>

<pallas_src>
import jax
import jax.numpy as jnp
from jax import lax
from jax.experimental import pallas as pl
from jax.experimental.pallas import tpu as pltpu


H = W = 9
FLAT = H * W          # 81
D_MID = 28
N_CLASSES = 10
BN_EPS = 1e-5


# --------------------------------------------------------------------------
# Fused forward kernel.
#   SMEM:  scal (14,) = [conv_b(4) | bn_gamma(5) | bn_beta(5)]
#   VMEM:  x (N,81) f32, stencils (4,81,81) bf16, colsums (4,81) f32,
#          w1 (81,28) bf16, haux (2,28) f32 = [b1 ; colsum(w1)],
#          w_fused (28,10) bf16, b2 (1,10) f32
#   out:   softmax output (N,10) f32, pre-lat features (N,28) f32
# --------------------------------------------------------------------------
def _latbuild_kernel(scal_ref, x_ref, s_ref, cs_ref, w1_ref, haux_ref,
                     wf_ref, b2_ref, out_ref, feat_ref):
    x = x_ref[...]                                           # (N, 81) f32 lane-dense

    def cb(i):   return scal_ref[i]          # conv bias (scalar, C=1)
    def gam(j):  return scal_ref[4 + j]      # BN gamma
    def bet(j):  return scal_ref[9 + j]      # BN beta

    def mxdot(a, b):
        # bf16 MXU operands, f32 accumulation; elementwise math stays f32.
        return jnp.dot(a.astype(jnp.bfloat16), b, preferred_element_type=jnp.float32)

    def stats(r, j):
        # BatchNorm2d (C=1), training-mode stats over all elements of (N,81).
        # One-pass form: both reductions are independent -> XLUs issue them
        # back-to-back instead of serializing mu before the (y-mu)^2 pass.
        mu = jnp.mean(r)
        ms = jnp.mean(r * r)
        var = ms - mu * mu
        scale = gam(j) * lax.rsqrt(var + BN_EPS)
        shift = bet(j) - mu * scale
        return scale, shift

    # Residual-path matmuls that depend only on x: issued up front, fully
    # hidden behind the rest of the dependency chain, and reused below.
    p0 = mxdot(x, s_ref[0]) + cb(0)          # x @ S0 + b0  (layer-0 pre-act, reused by block 2)
    q2 = mxdot(x, s_ref[2]) + cb(2)          # x @ S2 + b2  (residual feed of block 3)

    # ---- block 1 : conv layers 0,1 / BN 0,1 --------------------------------
    r0 = jnp.maximum(p0, 0.0)
    d1 = mxdot(r0, s_ref[1])                             # starts before stats(r0) finish
    s0, t0 = stats(r0, 0)
    p1 = s0 * d1 + (t0 * cs_ref[1:2, :] + cb(1))         # == bn0(r0) @ S1 + b1
    r1 = jnp.maximum(p1, 0.0)
    d2 = mxdot(r1, s_ref[0])
    s1, t1 = stats(r1, 1)
    # x1 = s1*r1 + t1 + x   (never materialized; folded into the next dot)

    # ---- block 2 : SAME layers/BN params as block 1 (self.x2 is self.x1),
    #                fresh batch statistics ----------------------------------
    p2 = s1 * d2 + t1 * cs_ref[0:1, :] + p0              # == x1 @ S0 + b0
    r2 = jnp.maximum(p2, 0.0)
    d3 = mxdot(r2, s_ref[1])
    s2, t2 = stats(r2, 0)
    p3 = s2 * d3 + (t2 * cs_ref[1:2, :] + cb(1))
    r3 = jnp.maximum(p3, 0.0)
    d4 = mxdot(r3, s_ref[2])
    s3, t3 = stats(r3, 1)
    # x2 = s3*r3 + t3 + x

    # ---- block 3 : conv layers 2,3 / BN 2,3 ---------------------------------
    p4 = s3 * d4 + t3 * cs_ref[2:3, :] + q2              # == x2 @ S2 + b2
    r4 = jnp.maximum(p4, 0.0)
    d5 = mxdot(r4, s_ref[3])
    s4, t4 = stats(r4, 2)
    p5 = s4 * d5 + (t4 * cs_ref[3:4, :] + cb(3))
    r5 = jnp.maximum(p5, 0.0)
    s5, t5 = stats(r5, 3)
    x3 = s5 * r5 + t5 + x                                 # block-3 output + residual

    # ---- tail: x4 = BN4(ReLU(x3)); MaxPool2d((1,1)) is the identity ---------
    r6 = jnp.maximum(x3, 0.0)
    dh = mxdot(r6, w1_ref[...])                           # overlaps the BN4 stats
    s6, t6 = stats(r6, 4)

    # ---- head: h = ReLU(x4 @ w1 + b1), BN4 deferred into the dot ------------
    hp = s6 * dh + (t6 * haux_ref[1:2, :] + haux_ref[0:1, :])
    h = jnp.maximum(hp, 0.0)                              # (N, 28)
    feat_ref[...] = h

    # ---- latlayer + Linear(28,10) constant-folded into wf; Softmax(dim=0)
    #      over the BATCH axis, as in the reference.
    logits = mxdot(h, wf_ref[...]) + b2_ref[...]
    m = jnp.max(logits, axis=0, keepdims=True)
    e = jnp.exp(logits - m)
    out_ref[...] = e * pl.reciprocal(jnp.sum(e, axis=0, keepdims=True), approx=True)


# --------------------------------------------------------------------------
# Host-side helpers.
# --------------------------------------------------------------------------
def _conv3x3_to_matrix(w33):
    """Build the (81_in, 81_out) matrix S s.t. flat_out = flat_in @ S equals the
    3x3 conv with padding=1 on a 9x9 image (single in/out channel)."""
    idx = jnp.arange(FLAT)
    ri, ci = idx // W, idx % W
    di = ri[:, None] - ri[None, :]            # input_row - output_row
    dj = ci[:, None] - ci[None, :]            # input_col - output_col
    valid = (jnp.abs(di) <= 1) & (jnp.abs(dj) <= 1)
    taps = w33[jnp.clip(di + 1, 0, 2), jnp.clip(dj + 1, 0, 2)]
    return jnp.where(valid, taps, 0.0).astype(jnp.float32)


def latbuild_forward(x_nchw, params):
    n = x_nchw.shape[0]
    # in_channels == 1: squeeze channel and flatten (N, 1, 9, 9) -> (N, 81).
    x = x_nchw[:, 0, :, :].reshape(n, FLAT).astype(jnp.float32)

    # Constant-foldable host prep (all tiny; folds away under jit with fixed params).
    s_f32 = jnp.stack([_conv3x3_to_matrix(params['conv_w'][i]) for i in range(4)])
    s_bf16 = s_f32.astype(jnp.bfloat16)                        # MXU operands
    cs = jnp.sum(s_f32, axis=1)                                # (4,81) colsum(S_i)

    covd = params['cov'] * (1.0 - jnp.eye(D_MID, dtype=jnp.float32))
    w_fused = (jnp.eye(D_MID, dtype=jnp.float32) + 0.1 * covd) @ params['w2']   # (28,10)

    scal = jnp.concatenate([params['conv_b'], params['bn_gamma'], params['bn_beta']])
    haux = jnp.stack([params['b1'][0], jnp.sum(params['w1'], axis=0)])           # (2,28)

    smem = pl.BlockSpec(memory_space=pltpu.MemorySpace.SMEM)
    vmem = pl.BlockSpec(memory_space=pltpu.MemorySpace.VMEM)

    # NOTE (large batch / v7x): add a grid over N marked "parallel" (megacore),
    # switch BN stats to a two-phase partial-sum + combine, and size the N-tile
    # against v7x's 64 MiB VMEM; at N=2 a gridless single call is optimal.
    return pl.pallas_call(
        _latbuild_kernel,
        out_shape=(
            jax.ShapeDtypeStruct((n, N_CLASSES), jnp.float32),
            jax.ShapeDtypeStruct((n, D_MID), jnp.float32),
        ),
        in_specs=[smem, vmem, vmem, vmem, vmem, vmem, vmem, vmem],
        out_specs=(vmem, vmem),
    )(scal, x, s_bf16, cs, params['w1'].astype(jnp.bfloat16), haux,
      w_fused.astype(jnp.bfloat16), params['b2'])


def init_params(key):
    ks = jax.random.split(key, 7)
    return dict(
        # 4 distinct conv layers: [x1-block a, x1-block b, x3-block a, x3-block b]
        conv_w=(jax.random.normal(ks[0], (4, 3, 3)) * 0.3).astype(jnp.float32),
        conv_b=(jax.random.normal(ks[1], (4,)) * 0.1).astype(jnp.float32),
        # 5 BN layers (0..3 pair with the conv layers, 4 is the x4 tail);
        # PyTorch defaults gamma=1, beta=0.
        bn_gamma=jnp.ones((5,), jnp.float32),
        bn_beta=jnp.zeros((5,), jnp.float32),
        w1=(jax.random.normal(ks[2], (FLAT, D_MID)) / jnp.sqrt(float(FLAT))
            ).astype(jnp.float32),
        b1=(jax.random.normal(ks[3], (1, D_MID)) * 0.05).astype(jnp.float32),
        cov=(jax.random.normal(ks[4], (D_MID, D_MID)) * 0.1).astype(jnp.float32),
        w2=(jax.random.normal(ks[5], (D_MID, N_CLASSES)) / jnp.sqrt(float(D_MID))
            ).astype(jnp.float32),
        b2=(jax.random.normal(ks[6], (1, N_CLASSES)) * 0.05).astype(jnp.float32),
    )


if __name__ == "__main__":
    key = jax.random.PRNGKey(0)
    k_param, k_x = jax.random.split(key)

    params = init_params(k_param)
    # N=2, C=1, 9x9 spatial so flatten(start_dim=1) gives 81 features.
    x = jax.random.normal(k_x, (2, 1, 9, 9), dtype=jnp.float32)

    fwd = jax.jit(latbuild_forward)
    out, feat = fwd(x, params)
    jax.block_until_ready((out, feat))

    assert out.shape == (2, 10) and feat.shape == (2, 28)
    assert bool(jnp.all(jnp.isfinite(out))) and bool(jnp.all(jnp.isfinite(feat)))
    print("KERNEL_OK")
</pallas_src>

<mosaic_0001>
module attributes {stable_mosaic.version = 11 : i64} {
  func.func @_latbuild_kernel(%arg0: memref<14xf32, #tpu.memory_space<smem>>, %arg1: memref<2x81xf32, #tpu.memory_space<vmem>>, %arg2: memref<4x81x81xbf16, #tpu.memory_space<vmem>>, %arg3: memref<4x81xf32, #tpu.memory_space<vmem>>, %arg4: memref<81x28xbf16, #tpu.memory_space<vmem>>, %arg5: memref<2x28xf32, #tpu.memory_space<vmem>>, %arg6: memref<28x10xbf16, #tpu.memory_space<vmem>>, %arg7: memref<1x10xf32, #tpu.memory_space<vmem>>, %arg8: memref<2x10xf32, #tpu.memory_space<vmem>>, %arg9: memref<2x28xf32, #tpu.memory_space<vmem>>) attributes {dimension_semantics = [], scalar_prefetch = 0 : i64, scratch_operands = 0 : i64, tpu.core_type = #tpu.core_type<tc>} {
    %c0 = arith.constant 0 : index
    %c0_0 = arith.constant 0 : index
    %0 = vector.load %arg1[%c0, %c0_0] : memref<2x81xf32, #tpu.memory_space<vmem>>, vector<2x81xf32>
    %c0_1 = arith.constant 0 : index
    %c0_2 = arith.constant 0 : index
    %c0_3 = arith.constant 0 : index
    %1 = vector.load %arg2[%c0_1, %c0_2, %c0_3] : memref<4x81x81xbf16, #tpu.memory_space<vmem>>, vector<1x81x81xbf16>
    %2 = vector.shape_cast %1 : vector<1x81x81xbf16> to vector<81x81xbf16>
    %3 = arith.truncf %0 : vector<2x81xf32> to vector<2x81xbf16>
    %cst = arith.constant dense<0.000000e+00> : vector<2x81xf32>
    %4 = tpu.matmul %3, %2, %cst {dimension_numbers = #tpu.dot_dimension_numbers<[1], [0], [0], [1], [0, 0, 1, 1], [], []>} : vector<2x81xbf16>, vector<81x81xbf16>, vector<2x81xf32> -> vector<2x81xf32>
    %c0_4 = arith.constant 0 : index
    %5 = memref.load %arg0[%c0_4] : memref<14xf32, #tpu.memory_space<smem>>
    %6 = vector.broadcast %5 : f32 to vector<2x81xf32>
    %7 = arith.addf %4, %6 : vector<2x81xf32>
    %c2 = arith.constant 2 : index
    %c0_5 = arith.constant 0 : index
    %c0_6 = arith.constant 0 : index
    %8 = vector.load %arg2[%c2, %c0_5, %c0_6] : memref<4x81x81xbf16, #tpu.memory_space<vmem>>, vector<1x81x81xbf16>
    %9 = vector.shape_cast %8 : vector<1x81x81xbf16> to vector<81x81xbf16>
    %10 = arith.truncf %0 : vector<2x81xf32> to vector<2x81xbf16>
    %cst_7 = arith.constant dense<0.000000e+00> : vector<2x81xf32>
    %11 = tpu.matmul %10, %9, %cst_7 {dimension_numbers = #tpu.dot_dimension_numbers<[1], [0], [0], [1], [0, 0, 1, 1], [], []>} : vector<2x81xbf16>, vector<81x81xbf16>, vector<2x81xf32> -> vector<2x81xf32>
    %c2_8 = arith.constant 2 : index
    %12 = memref.load %arg0[%c2_8] : memref<14xf32, #tpu.memory_space<smem>>
    %13 = vector.broadcast %12 : f32 to vector<2x81xf32>
    %14 = arith.addf %11, %13 : vector<2x81xf32>
    %cst_9 = arith.constant 0.000000e+00 : f32
    %15 = vector.broadcast %cst_9 : f32 to vector<2x81xf32>
    %16 = arith.maximumf %7, %15 : vector<2x81xf32>
    %c1 = arith.constant 1 : index
    %c0_10 = arith.constant 0 : index
    %c0_11 = arith.constant 0 : index
    %17 = vector.load %arg2[%c1, %c0_10, %c0_11] : memref<4x81x81xbf16, #tpu.memory_space<vmem>>, vector<1x81x81xbf16>
    %18 = vector.shape_cast %17 : vector<1x81x81xbf16> to vector<81x81xbf16>
    %19 = arith.truncf %16 : vector<2x81xf32> to vector<2x81xbf16>
    %cst_12 = arith.constant dense<0.000000e+00> : vector<2x81xf32>
    %20 = tpu.matmul %19, %18, %cst_12 {dimension_numbers = #tpu.dot_dimension_numbers<[1], [0], [0], [1], [0, 0, 1, 1], [], []>} : vector<2x81xbf16>, vector<81x81xbf16>, vector<2x81xf32> -> vector<2x81xf32>
    %21 = vector.shape_cast %16 : vector<2x81xf32> to vector<1x2x81xf32>
    %cst_13 = arith.constant dense<0.000000e+00> : vector<1xf32>
    %22 = vector.multi_reduction <add>, %21, %cst_13 [1, 2] : vector<1x2x81xf32> to vector<1xf32>
    %23 = vector.shape_cast %22 : vector<1xf32> to vector<1x1x1xf32>
    %24 = vector.extract %23[0, 0, 0] : f32 from vector<1x1x1xf32>
    %cst_14 = arith.constant 1.620000e+02 : f32
    %25 = arith.divf %24, %cst_14 : f32
    %26 = arith.mulf %16, %16 : vector<2x81xf32>
    %27 = vector.shape_cast %26 : vector<2x81xf32> to vector<1x2x81xf32>
    %cst_15 = arith.constant dense<0.000000e+00> : vector<1xf32>
    %28 = vector.multi_reduction <add>, %27, %cst_15 [1, 2] : vector<1x2x81xf32> to vector<1xf32>
    %29 = vector.shape_cast %28 : vector<1xf32> to vector<1x1x1xf32>
    %30 = vector.extract %29[0, 0, 0] : f32 from vector<1x1x1xf32>
    %cst_16 = arith.constant 1.620000e+02 : f32
    %31 = arith.divf %30, %cst_16 : f32
    %32 = arith.mulf %25, %25 : f32
    %33 = arith.subf %31, %32 : f32
    %c4 = arith.constant 4 : index
    %34 = memref.load %arg0[%c4] : memref<14xf32, #tpu.memory_space<smem>>
    %cst_17 = arith.constant 9.99999974E-6 : f32
    %35 = arith.addf %33, %cst_17 : f32
    %36 = math.rsqrt %35 : f32
    %37 = arith.mulf %34, %36 : f32
    %c9 = arith.constant 9 : index
    %38 = memref.load %arg0[%c9] : memref<14xf32, #tpu.memory_space<smem>>
    %39 = arith.mulf %25, %37 : f32
    %40 = arith.subf %38, %39 : f32
    %41 = vector.broadcast %37 : f32 to vector<2x81xf32>
    %42 = arith.mulf %41, %20 : vector<2x81xf32>
    %c1_18 = arith.constant 1 : index
    %c0_19 = arith.constant 0 : index
    %43 = vector.load %arg3[%c1_18, %c0_19] : memref<4x81xf32, #tpu.memory_space<vmem>>, vector<1x81xf32>
    %44 = vector.broadcast %40 : f32 to vector<1x81xf32>
    %45 = arith.mulf %44, %43 : vector<1x81xf32>
    %c1_20 = arith.constant 1 : index
    %46 = memref.load %arg0[%c1_20] : memref<14xf32, #tpu.memory_space<smem>>
    %47 = vector.broadcast %46 : f32 to vector<1x81xf32>
    %48 = arith.addf %45, %47 : vector<1x81xf32>
    %49 = vector.broadcast %48 : vector<1x81xf32> to vector<2x81xf32>
    %50 = arith.addf %42, %49 : vector<2x81xf32>
    %cst_21 = arith.constant 0.000000e+00 : f32
    %51 = vector.broadcast %cst_21 : f32 to vector<2x81xf32>
    %52 = arith.maximumf %50, %51 : vector<2x81xf32>
    %c0_22 = arith.constant 0 : index
    %c0_23 = arith.constant 0 : index
    %c0_24 = arith.constant 0 : index
    %53 = vector.load %arg2[%c0_22, %c0_23, %c0_24] : memref<4x81x81xbf16, #tpu.memory_space<vmem>>, vector<1x81x81xbf16>
    %54 = vector.shape_cast %53 : vector<1x81x81xbf16> to vector<81x81xbf16>
    %55 = arith.truncf %52 : vector<2x81xf32> to vector<2x81xbf16>
    %cst_25 = arith.constant dense<0.000000e+00> : vector<2x81xf32>
    %56 = tpu.matmul %55, %54, %cst_25 {dimension_numbers = #tpu.dot_dimension_numbers<[1], [0], [0], [1], [0, 0, 1, 1], [], []>} : vector<2x81xbf16>, vector<81x81xbf16>, vector<2x81xf32> -> vector<2x81xf32>
    %57 = vector.shape_cast %52 : vector<2x81xf32> to vector<1x2x81xf32>
    %cst_26 = arith.constant dense<0.000000e+00> : vector<1xf32>
    %58 = vector.multi_reduction <add>, %57, %cst_26 [1, 2] : vector<1x2x81xf32> to vector<1xf32>
    %59 = vector.shape_cast %58 : vector<1xf32> to vector<1x1x1xf32>
    %60 = vector.extract %59[0, 0, 0] : f32 from vector<1x1x1xf32>
    %cst_27 = arith.constant 1.620000e+02 : f32
    %61 = arith.divf %60, %cst_27 : f32
    %62 = arith.mulf %52, %52 : vector<2x81xf32>
    %63 = vector.shape_cast %62 : vector<2x81xf32> to vector<1x2x81xf32>
    %cst_28 = arith.constant dense<0.000000e+00> : vector<1xf32>
    %64 = vector.multi_reduction <add>, %63, %cst_28 [1, 2] : vector<1x2x81xf32> to vector<1xf32>
    %65 = vector.shape_cast %64 : vector<1xf32> to vector<1x1x1xf32>
    %66 = vector.extract %65[0, 0, 0] : f32 from vector<1x1x1xf32>
    %cst_29 = arith.constant 1.620000e+02 : f32
    %67 = arith.divf %66, %cst_29 : f32
    %68 = arith.mulf %61, %61 : f32
    %69 = arith.subf %67, %68 : f32
    %c5 = arith.constant 5 : index
    %70 = memref.load %arg0[%c5] : memref<14xf32, #tpu.memory_space<smem>>
    %cst_30 = arith.constant 9.99999974E-6 : f32
    %71 = arith.addf %69, %cst_30 : f32
    %72 = math.rsqrt %71 : f32
    %73 = arith.mulf %70, %72 : f32
    %c10 = arith.constant 10 : index
    %74 = memref.load %arg0[%c10] : memref<14xf32, #tpu.memory_space<smem>>
    %75 = arith.mulf %61, %73 : f32
    %76 = arith.subf %74, %75 : f32
    %77 = vector.broadcast %73 : f32 to vector<2x81xf32>
    %78 = arith.mulf %77, %56 : vector<2x81xf32>
    %c0_31 = arith.constant 0 : index
    %c0_32 = arith.constant 0 : index
    %79 = vector.load %arg3[%c0_31, %c0_32] : memref<4x81xf32, #tpu.memory_space<vmem>>, vector<1x81xf32>
    %80 = vector.broadcast %76 : f32 to vector<1x81xf32>
    %81 = arith.mulf %80, %79 : vector<1x81xf32>
    %82 = vector.broadcast %81 : vector<1x81xf32> to vector<2x81xf32>
    %83 = arith.addf %78, %82 : vector<2x81xf32>
    %84 = arith.addf %83, %7 : vector<2x81xf32>
    %cst_33 = arith.constant 0.000000e+00 : f32
    %85 = vector.broadcast %cst_33 : f32 to vector<2x81xf32>
    %86 = arith.maximumf %84, %85 : vector<2x81xf32>
    %c1_34 = arith.constant 1 : index
    %c0_35 = arith.constant 0 : index
    %c0_36 = arith.constant 0 : index
    %87 = vector.load %arg2[%c1_34, %c0_35, %c0_36] : memref<4x81x81xbf16, #tpu.memory_space<vmem>>, vector<1x81x81xbf16>
    %88 = vector.shape_cast %87 : vector<1x81x81xbf16> to vector<81x81xbf16>
    %89 = arith.truncf %86 : vector<2x81xf32> to vector<2x81xbf16>
    %cst_37 = arith.constant dense<0.000000e+00> : vector<2x81xf32>
    %90 = tpu.matmul %89, %88, %cst_37 {dimension_numbers = #tpu.dot_dimension_numbers<[1], [0], [0], [1], [0, 0, 1, 1], [], []>} : vector<2x81xbf16>, vector<81x81xbf16>, vector<2x81xf32> -> vector<2x81xf32>
    %91 = vector.shape_cast %86 : vector<2x81xf32> to vector<1x2x81xf32>
    %cst_38 = arith.constant dense<0.000000e+00> : vector<1xf32>
    %92 = vector.multi_reduction <add>, %91, %cst_38 [1, 2] : vector<1x2x81xf32> to vector<1xf32>
    %93 = vector.shape_cast %92 : vector<1xf32> to vector<1x1x1xf32>
    %94 = vector.extract %93[0, 0, 0] : f32 from vector<1x1x1xf32>
    %cst_39 = arith.constant 1.620000e+02 : f32
    %95 = arith.divf %94, %cst_39 : f32
    %96 = arith.mulf %86, %86 : vector<2x81xf32>
    %97 = vector.shape_cast %96 : vector<2x81xf32> to vector<1x2x81xf32>
    %cst_40 = arith.constant dense<0.000000e+00> : vector<1xf32>
    %98 = vector.multi_reduction <add>, %97, %cst_40 [1, 2] : vector<1x2x81xf32> to vector<1xf32>
    %99 = vector.shape_cast %98 : vector<1xf32> to vector<1x1x1xf32>
    %100 = vector.extract %99[0, 0, 0] : f32 from vector<1x1x1xf32>
    %cst_41 = arith.constant 1.620000e+02 : f32
    %101 = arith.divf %100, %cst_41 : f32
    %102 = arith.mulf %95, %95 : f32
    %103 = arith.subf %101, %102 : f32
    %c4_42 = arith.constant 4 : index
    %104 = memref.load %arg0[%c4_42] : memref<14xf32, #tpu.memory_space<smem>>
    %cst_43 = arith.constant 9.99999974E-6 : f32
    %105 = arith.addf %103, %cst_43 : f32
    %106 = math.rsqrt %105 : f32
    %107 = arith.mulf %104, %106 : f32
    %c9_44 = arith.constant 9 : index
    %108 = memref.load %arg0[%c9_44] : memref<14xf32, #tpu.memory_space<smem>>
    %109 = arith.mulf %95, %107 : f32
    %110 = arith.subf %108, %109 : f32
    %111 = vector.broadcast %107 : f32 to vector<2x81xf32>
    %112 = arith.mulf %111, %90 : vector<2x81xf32>
    %c1_45 = arith.constant 1 : index
    %c0_46 = arith.constant 0 : index
    %113 = vector.load %arg3[%c1_45, %c0_46] : memref<4x81xf32, #tpu.memory_space<vmem>>, vector<1x81xf32>
    %114 = vector.broadcast %110 : f32 to vector<1x81xf32>
    %115 = arith.mulf %114, %113 : vector<1x81xf32>
    %c1_47 = arith.constant 1 : index
    %116 = memref.load %arg0[%c1_47] : memref<14xf32, #tpu.memory_space<smem>>
    %117 = vector.broadcast %116 : f32 to vector<1x81xf32>
    %118 = arith.addf %115, %117 : vector<1x81xf32>
    %119 = vector.broadcast %118 : vector<1x81xf32> to vector<2x81xf32>
    %120 = arith.addf %112, %119 : vector<2x81xf32>
    %cst_48 = arith.constant 0.000000e+00 : f32
    %121 = vector.broadcast %cst_48 : f32 to vector<2x81xf32>
    %122 = arith.maximumf %120, %121 : vector<2x81xf32>
    %c2_49 = arith.constant 2 : index
    %c0_50 = arith.constant 0 : index
    %c0_51 = arith.constant 0 : index
    %123 = vector.load %arg2[%c2_49, %c0_50, %c0_51] : memref<4x81x81xbf16, #tpu.memory_space<vmem>>, vector<1x81x81xbf16>
    %124 = vector.shape_cast %123 : vector<1x81x81xbf16> to vector<81x81xbf16>
    %125 = arith.truncf %122 : vector<2x81xf32> to vector<2x81xbf16>
    %cst_52 = arith.constant dense<0.000000e+00> : vector<2x81xf32>
    %126 = tpu.matmul %125, %124, %cst_52 {dimension_numbers = #tpu.dot_dimension_numbers<[1], [0], [0], [1], [0, 0, 1, 1], [], []>} : vector<2x81xbf16>, vector<81x81xbf16>, vector<2x81xf32> -> vector<2x81xf32>
    %127 = vector.shape_cast %122 : vector<2x81xf32> to vector<1x2x81xf32>
    %cst_53 = arith.constant dense<0.000000e+00> : vector<1xf32>
    %128 = vector.multi_reduction <add>, %127, %cst_53 [1, 2] : vector<1x2x81xf32> to vector<1xf32>
    %129 = vector.shape_cast %128 : vector<1xf32> to vector<1x1x1xf32>
    %130 = vector.extract %129[0, 0, 0] : f32 from vector<1x1x1xf32>
    %cst_54 = arith.constant 1.620000e+02 : f32
    %131 = arith.divf %130, %cst_54 : f32
    %132 = arith.mulf %122, %122 : vector<2x81xf32>
    %133 = vector.shape_cast %132 : vector<2x81xf32> to vector<1x2x81xf32>
    %cst_55 = arith.constant dense<0.000000e+00> : vector<1xf32>
    %134 = vector.multi_reduction <add>, %133, %cst_55 [1, 2] : vector<1x2x81xf32> to vector<1xf32>
    %135 = vector.shape_cast %134 : vector<1xf32> to vector<1x1x1xf32>
    %136 = vector.extract %135[0, 0, 0] : f32 from vector<1x1x1xf32>
    %cst_56 = arith.constant 1.620000e+02 : f32
    %137 = arith.divf %136, %cst_56 : f32
    %138 = arith.mulf %131, %131 : f32
    %139 = arith.subf %137, %138 : f32
    %c5_57 = arith.constant 5 : index
    %140 = memref.load %arg0[%c5_57] : memref<14xf32, #tpu.memory_space<smem>>
    %cst_58 = arith.constant 9.99999974E-6 : f32
    %141 = arith.addf %139, %cst_58 : f32
    %142 = math.rsqrt %141 : f32
    %143 = arith.mulf %140, %142 : f32
    %c10_59 = arith.constant 10 : index
    %144 = memref.load %arg0[%c10_59] : memref<14xf32, #tpu.memory_space<smem>>
    %145 = arith.mulf %131, %143 : f32
    %146 = arith.subf %144, %145 : f32
    %147 = vector.broadcast %143 : f32 to vector<2x81xf32>
    %148 = arith.mulf %147, %126 : vector<2x81xf32>
    %c2_60 = arith.constant 2 : index
    %c0_61 = arith.constant 0 : index
    %149 = vector.load %arg3[%c2_60, %c0_61] : memref<4x81xf32, #tpu.memory_space<vmem>>, vector<1x81xf32>
    %150 = vector.broadcast %146 : f32 to vector<1x81xf32>
    %151 = arith.mulf %150, %149 : vector<1x81xf32>
    %152 = vector.broadcast %151 : vector<1x81xf32> to vector<2x81xf32>
    %153 = arith.addf %148, %152 : vector<2x81xf32>
    %154 = arith.addf %153, %14 : vector<2x81xf32>
    %cst_62 = arith.constant 0.000000e+00 : f32
    %155 = vector.broadcast %cst_62 : f32 to vector<2x81xf32>
    %156 = arith.maximumf %154, %155 : vector<2x81xf32>
    %c3 = arith.constant 3 : index
    %c0_63 = arith.constant 0 : index
    %c0_64 = arith.constant 0 : index
    %157 = vector.load %arg2[%c3, %c0_63, %c0_64] : memref<4x81x81xbf16, #tpu.memory_space<vmem>>, vector<1x81x81xbf16>
    %158 = vector.shape_cast %157 : vector<1x81x81xbf16> to vector<81x81xbf16>
    %159 = arith.truncf %156 : vector<2x81xf32> to vector<2x81xbf16>
    %cst_65 = arith.constant dense<0.000000e+00> : vector<2x81xf32>
    %160 = tpu.matmul %159, %158, %cst_65 {dimension_numbers = #tpu.dot_dimension_numbers<[1], [0], [0], [1], [0, 0, 1, 1], [], []>} : vector<2x81xbf16>, vector<81x81xbf16>, vector<2x81xf32> -> vector<2x81xf32>
    %161 = vector.shape_cast %156 : vector<2x81xf32> to vector<1x2x81xf32>
    %cst_66 = arith.constant dense<0.000000e+00> : vector<1xf32>
    %162 = vector.multi_reduction <add>, %161, %cst_66 [1, 2] : vector<1x2x81xf32> to vector<1xf32>
    %163 = vector.shape_cast %162 : vector<1xf32> to vector<1x1x1xf32>
    %164 = vector.extract %163[0, 0, 0] : f32 from vector<1x1x1xf32>
    %cst_67 = arith.constant 1.620000e+02 : f32
    %165 = arith.divf %164, %cst_67 : f32
    %166 = arith.mulf %156, %156 : vector<2x81xf32>
    %167 = vector.shape_cast %166 : vector<2x81xf32> to vector<1x2x81xf32>
    %cst_68 = arith.constant dense<0.000000e+00> : vector<1xf32>
    %168 = vector.multi_reduction <add>, %167, %cst_68 [1, 2] : vector<1x2x81xf32> to vector<1xf32>
    %169 = vector.shape_cast %168 : vector<1xf32> to vector<1x1x1xf32>
    %170 = vector.extract %169[0, 0, 0] : f32 from vector<1x1x1xf32>
    %cst_69 = arith.constant 1.620000e+02 : f32
    %171 = arith.divf %170, %cst_69 : f32
    %172 = arith.mulf %165, %165 : f32
    %173 = arith.subf %171, %172 : f32
    %c6 = arith.constant 6 : index
    %174 = memref.load %arg0[%c6] : memref<14xf32, #tpu.memory_space<smem>>
    %cst_70 = arith.constant 9.99999974E-6 : f32
    %175 = arith.addf %173, %cst_70 : f32
    %176 = math.rsqrt %175 : f32
    %177 = arith.mulf %174, %176 : f32
    %c11 = arith.constant 11 : index
    %178 = memref.load %arg0[%c11] : memref<14xf32, #tpu.memory_space<smem>>
    %179 = arith.mulf %165, %177 : f32
    %180 = arith.subf %178, %179 : f32
    %181 = vector.broadcast %177 : f32 to vector<2x81xf32>
    %182 = arith.mulf %181, %160 : vector<2x81xf32>
    %c3_71 = arith.constant 3 : index
    %c0_72 = arith.constant 0 : index
    %183 = vector.load %arg3[%c3_71, %c0_72] : memref<4x81xf32, #tpu.memory_space<vmem>>, vector<1x81xf32>
    %184 = vector.broadcast %180 : f32 to vector<1x81xf32>
    %185 = arith.mulf %184, %183 : vector<1x81xf32>
    %c3_73 = arith.constant 3 : index
    %186 = memref.load %arg0[%c3_73] : memref<14xf32, #tpu.memory_space<smem>>
    %187 = vector.broadcast %186 : f32 to vector<1x81xf32>
    %188 = arith.addf %185, %187 : vector<1x81xf32>
    %189 = vector.broadcast %188 : vector<1x81xf32> to vector<2x81xf32>
    %190 = arith.addf %182, %189 : vector<2x81xf32>
    %cst_74 = arith.constant 0.000000e+00 : f32
    %191 = vector.broadcast %cst_74 : f32 to vector<2x81xf32>
    %192 = arith.maximumf %190, %191 : vector<2x81xf32>
    %193 = vector.shape_cast %192 : vector<2x81xf32> to vector<1x2x81xf32>
    %cst_75 = arith.constant dense<0.000000e+00> : vector<1xf32>
    %194 = vector.multi_reduction <add>, %193, %cst_75 [1, 2] : vector<1x2x81xf32> to vector<1xf32>
    %195 = vector.shape_cast %194 : vector<1xf32> to vector<1x1x1xf32>
    %196 = vector.extract %195[0, 0, 0] : f32 from vector<1x1x1xf32>
    %cst_76 = arith.constant 1.620000e+02 : f32
    %197 = arith.divf %196, %cst_76 : f32
    %198 = arith.mulf %192, %192 : vector<2x81xf32>
    %199 = vector.shape_cast %198 : vector<2x81xf32> to vector<1x2x81xf32>
    %cst_77 = arith.constant dense<0.000000e+00> : vector<1xf32>
    %200 = vector.multi_reduction <add>, %199, %cst_77 [1, 2] : vector<1x2x81xf32> to vector<1xf32>
    %201 = vector.shape_cast %200 : vector<1xf32> to vector<1x1x1xf32>
    %202 = vector.extract %201[0, 0, 0] : f32 from vector<1x1x1xf32>
    %cst_78 = arith.constant 1.620000e+02 : f32
    %203 = arith.divf %202, %cst_78 : f32
    %204 = arith.mulf %197, %197 : f32
    %205 = arith.subf %203, %204 : f32
    %c7 = arith.constant 7 : index
    %206 = memref.load %arg0[%c7] : memref<14xf32, #tpu.memory_space<smem>>
    %cst_79 = arith.constant 9.99999974E-6 : f32
    %207 = arith.addf %205, %cst_79 : f32
    %208 = math.rsqrt %207 : f32
    %209 = arith.mulf %206, %208 : f32
    %c12 = arith.constant 12 : index
    %210 = memref.load %arg0[%c12] : memref<14xf32, #tpu.memory_space<smem>>
    %211 = arith.mulf %197, %209 : f32
    %212 = arith.subf %210, %211 : f32
    %213 = vector.broadcast %209 : f32 to vector<2x81xf32>
    %214 = arith.mulf %213, %192 : vector<2x81xf32>
    %215 = vector.broadcast %212 : f32 to vector<2x81xf32>
    %216 = arith.addf %214, %215 : vector<2x81xf32>
    %217 = arith.addf %216, %0 : vector<2x81xf32>
    %cst_80 = arith.constant 0.000000e+00 : f32
    %218 = vector.broadcast %cst_80 : f32 to vector<2x81xf32>
    %219 = arith.maximumf %217, %218 : vector<2x81xf32>
    %c0_81 = arith.constant 0 : index
    %c0_82 = arith.constant 0 : index
    %220 = vector.load %arg4[%c0_81, %c0_82] : memref<81x28xbf16, #tpu.memory_space<vmem>>, vector<81x28xbf16>
    %221 = arith.truncf %219 : vector<2x81xf32> to vector<2x81xbf16>
    %cst_83 = arith.constant dense<0.000000e+00> : vector<2x28xf32>
    %222 = tpu.matmul %221, %220, %cst_83 {dimension_numbers = #tpu.dot_dimension_numbers<[1], [0], [0], [1], [0, 0, 1, 1], [], []>} : vector<2x81xbf16>, vector<81x28xbf16>, vector<2x28xf32> -> vector<2x28xf32>
    %223 = vector.shape_cast %219 : vector<2x81xf32> to vector<1x2x81xf32>
    %cst_84 = arith.constant dense<0.000000e+00> : vector<1xf32>
    %224 = vector.multi_reduction <add>, %223, %cst_84 [1, 2] : vector<1x2x81xf32> to vector<1xf32>
    %225 = vector.shape_cast %224 : vector<1xf32> to vector<1x1x1xf32>
    %226 = vector.extract %225[0, 0, 0] : f32 from vector<1x1x1xf32>
    %cst_85 = arith.constant 1.620000e+02 : f32
    %227 = arith.divf %226, %cst_85 : f32
    %228 = arith.mulf %219, %219 : vector<2x81xf32>
    %229 = vector.shape_cast %228 : vector<2x81xf32> to vector<1x2x81xf32>
    %cst_86 = arith.constant dense<0.000000e+00> : vector<1xf32>
    %230 = vector.multi_reduction <add>, %229, %cst_86 [1, 2] : vector<1x2x81xf32> to vector<1xf32>
    %231 = vector.shape_cast %230 : vector<1xf32> to vector<1x1x1xf32>
    %232 = vector.extract %231[0, 0, 0] : f32 from vector<1x1x1xf32>
    %cst_87 = arith.constant 1.620000e+02 : f32
    %233 = arith.divf %232, %cst_87 : f32
    %234 = arith.mulf %227, %227 : f32
    %235 = arith.subf %233, %234 : f32
    %c8 = arith.constant 8 : index
    %236 = memref.load %arg0[%c8] : memref<14xf32, #tpu.memory_space<smem>>
    %cst_88 = arith.constant 9.99999974E-6 : f32
    %237 = arith.addf %235, %cst_88 : f32
    %238 = math.rsqrt %237 : f32
    %239 = arith.mulf %236, %238 : f32
    %c13 = arith.constant 13 : index
    %240 = memref.load %arg0[%c13] : memref<14xf32, #tpu.memory_space<smem>>
    %241 = arith.mulf %227, %239 : f32
    %242 = arith.subf %240, %241 : f32
    %243 = vector.broadcast %239 : f32 to vector<2x28xf32>
    %244 = arith.mulf %243, %222 : vector<2x28xf32>
    %c1_89 = arith.constant 1 : index
    %c0_90 = arith.constant 0 : index
    %245 = vector.load %arg5[%c1_89, %c0_90] : memref<2x28xf32, #tpu.memory_space<vmem>>, vector<1x28xf32>
    %246 = vector.broadcast %242 : f32 to vector<1x28xf32>
    %247 = arith.mulf %246, %245 : vector<1x28xf32>
    %c0_91 = arith.constant 0 : index
    %c0_92 = arith.constant 0 : index
    %248 = vector.load %arg5[%c0_91, %c0_92] : memref<2x28xf32, #tpu.memory_space<vmem>>, vector<1x28xf32>
    %249 = arith.addf %247, %248 : vector<1x28xf32>
    %250 = vector.broadcast %249 : vector<1x28xf32> to vector<2x28xf32>
    %251 = arith.addf %244, %250 : vector<2x28xf32>
    %cst_93 = arith.constant 0.000000e+00 : f32
    %252 = vector.broadcast %cst_93 : f32 to vector<2x28xf32>
    %253 = arith.maximumf %251, %252 : vector<2x28xf32>
    %c0_94 = arith.constant 0 : index
    %c0_95 = arith.constant 0 : index
    %254 = vector.load %arg9[%c0_94, %c0_95] : memref<2x28xf32, #tpu.memory_space<vmem>>, vector<2x28xf32>
    tpu.vector_store %arg9[%c0_94, %c0_95], %253 {strides = array<i32>} : memref<2x28xf32, #tpu.memory_space<vmem>>, vector<2x28xf32>,
    %c0_96 = arith.constant 0 : index
    %c0_97 = arith.constant 0 : index
    %255 = vector.load %arg6[%c0_96, %c0_97] : memref<28x10xbf16, #tpu.memory_space<vmem>>, vector<28x10xbf16>
    %256 = arith.truncf %253 : vector<2x28xf32> to vector<2x28xbf16>
    %cst_98 = arith.constant dense<0.000000e+00> : vector<2x10xf32>
    %257 = tpu.matmul %256, %255, %cst_98 {dimension_numbers = #tpu.dot_dimension_numbers<[1], [0], [0], [1], [0, 0, 1, 1], [], []>} : vector<2x28xbf16>, vector<28x10xbf16>, vector<2x10xf32> -> vector<2x10xf32>
    %c0_99 = arith.constant 0 : index
    %c0_100 = arith.constant 0 : index
    %258 = vector.load %arg7[%c0_99, %c0_100] : memref<1x10xf32, #tpu.memory_space<vmem>>, vector<1x10xf32>
    %259 = vector.broadcast %258 : vector<1x10xf32> to vector<2x10xf32>
    %260 = arith.addf %257, %259 : vector<2x10xf32>
    %cst_101 = arith.constant dense<0xFF800000> : vector<10xf32>
    %261 = vector.multi_reduction <maximumf>, %260, %cst_101 [0] : vector<2x10xf32> to vector<10xf32>
    %262 = vector.shape_cast %261 : vector<10xf32> to vector<1x10xf32>
    %263 = vector.broadcast %262 : vector<1x10xf32> to vector<2x10xf32>
    %264 = arith.subf %260, %263 : vector<2x10xf32>
    %265 = math.exp %264 : vector<2x10xf32>
    %cst_102 = arith.constant dense<0.000000e+00> : vector<10xf32>
    %266 = vector.multi_reduction <add>, %265, %cst_102 [0] : vector<2x10xf32> to vector<10xf32>
    %267 = vector.shape_cast %266 : vector<10xf32> to vector<1x10xf32>
    %268 = tpu.reciprocal %267 {approx = true} : vector<1x10xf32> -> vector<1x10xf32>
    %269 = vector.broadcast %268 : vector<1x10xf32> to vector<2x10xf32>
    %270 = arith.mulf %265, %269 : vector<2x10xf32>
    %c0_103 = arith.constant 0 : index
    %c0_104 = arith.constant 0 : index
    %271 = vector.load %arg8[%c0_103, %c0_104] : memref<2x10xf32, #tpu.memory_space<vmem>>, vector<2x10xf32>
    tpu.vector_store %arg8[%c0_103, %c0_104], %270 {strides = array<i32>} : memref<2x10xf32, #tpu.memory_space<vmem>>, vector<2x10xf32>,
    return
  }
}

</mosaic_0001>

<llo_original>
// kernel: squeeze.5
$region0: #{squeeze.5}
  %s0 = inlined_call_operand.vmem [shape: f32[2,9,9], index: 0, kind: input, shape index: {}]
  %s1 = inlined_call_operand.vmem [shape: f32[2,81], index: 1, kind: output, shape index: {}]
  $region1: #{squeeze.5} parent=0
    #allocation0 [shape = 'u8[4096]{0}', space=vmem, size = 0x1000, scoped, tag = 'scoped mem for output reshape']
    %s2 = smov 3
    %v3 = vld [vmem:[%s0] ss:$16 sm:%s2]
    %vm4 = vcmask 72704
    %5 = vst.msk [vmem:[#allocation0] sm:$0x3] %vm4, %v3
    %s6 = scalar_lea.vmem %s0, 8
    %s7 = smov 3
    %v8 = vld [vmem:[%s6] ss:$16 sm:%s7]
    %9 = vrot.lane.b32.xlu0 %v8, 72
    %v10 = vpop.permute.xlu0 %9
    %vm11 = vcmask 663104
    %12 = vst.msk [vmem:[#allocation0] sm:$0x3] %vm11, %v10
    %s13 = scalar_lea.vmem %s0, 7
    %s14 = smov 3
    %v15 = vld [vmem:[%s13] ss:$16 sm:%s14]
    %16 = vrot.lane.b32.xlu0 %v15, 63
    %v17 = vpop.permute.xlu0 %16
    %vm18 = vcmask 589304
    %19 = vst.msk [vmem:[#allocation0] sm:$0x3] %vm18, %v17
    %s20 = scalar_lea.vmem %s0, 6
    %s21 = smov 3
    %v22 = vld [vmem:[%s20] ss:$16 sm:%s21]
    %23 = vrot.lane.b32.xlu0 %v22, 54
    %v24 = vpop.permute.xlu0 %23
    %vm25 = vcmask 515504
    %26 = vst.msk [vmem:[#allocation0] sm:$0x3] %vm25, %v24
    %s27 = scalar_lea.vmem %s0, 5
    %s28 = smov 3
    %v29 = vld [vmem:[%s27] ss:$16 sm:%s28]
    %30 = vrot.lane.b32.xlu0 %v29, 45
    %v31 = vpop.permute.xlu0 %30
    %vm32 = vcmask 441704
    %33 = vst.msk [vmem:[#allocation0] sm:$0x3] %vm32, %v31
    %s34 = scalar_lea.vmem %s0, 4
    %s35 = smov 3
    %v36 = vld [vmem:[%s34] ss:$16 sm:%s35]
    %37 = vrot.lane.b32.xlu0 %v36, 36
    %v38 = vpop.permute.xlu0 %37
    %vm39 = vcmask 367904
    %40 = vst.msk [vmem:[#allocation0] sm:$0x3] %vm39, %v38
    %s41 = scalar_lea.vmem %s0, 3
    %s42 = smov 3
    %v43 = vld [vmem:[%s41] ss:$16 sm:%s42]
    %44 = vrot.lane.b32.xlu0 %v43, 27
    %v45 = vpop.permute.xlu0 %44
    %vm46 = vcmask 294104
    %47 = vst.msk [vmem:[#allocation0] sm:$0x3] %vm46, %v45
    %s48 = scalar_lea.vmem %s0, 2
    %s49 = smov 3
    %v50 = vld [vmem:[%s48] ss:$16 sm:%s49]
    %51 = vrot.lane.b32.xlu0 %v50, 18
    %v52 = vpop.permute.xlu0 %51
    %vm53 = vcmask 220304
    %54 = vst.msk [vmem:[#allocation0] sm:$0x3] %vm53, %v52
    %s55 = scalar_lea.vmem %s0, 1
    %s56 = smov 3
    %v57 = vld [vmem:[%s55] ss:$16 sm:%s56]
    %58 = vrot.lane.b32.xlu0 %v57, 9
    %v59 = vpop.permute.xlu0 %58
    %vm60 = vcmask 146504
    %61 = vst.msk [vmem:[#allocation0] sm:$0x3] %vm60, %v59
    %s63 = ssub.s32 4, 1
    %v64 = vld [vmem:[#allocation0] sm:%s63]
    %s66 = ssub.s32 4, 1
    %67 = vst [vmem:[%s1] sm:%s66] %v64

// kernel: latbuild_forward.1
$region0: #{latbuild_forward.1}
  #allocation0 [shape = 'u32[]', space=smem, size = 0x4, offset = 0x4, fixed_abs, tag = 'smem constant byte address 0x4 - core index']
  #allocation1 [shape = 'u32[72,128]{1,0:T(1,128)}', space=vmem, size = 0x9000, scoped, tag = 'internal scratch']
  %s0 = inlined_call_operand.vmem [shape: f32[14], index: 0, kind: input, shape index: {}]
  %s1 = inlined_call_operand.vmem [shape: f32[2,81], index: 1, kind: input, shape index: {}]
  %s2 = inlined_call_operand.vmem [shape: bf16[4,81,81], index: 2, kind: input, shape index: {}]
  %s3 = inlined_call_operand.vmem [shape: f32[4,81], index: 3, kind: input, shape index: {}]
  %s4 = inlined_call_operand.vmem [shape: bf16[81,28], index: 4, kind: input, shape index: {}]
  %s5 = inlined_call_operand.vmem [shape: f32[2,28], index: 5, kind: input, shape index: {}]
  %s6 = inlined_call_operand.vmem [shape: bf16[28,10], index: 6, kind: input, shape index: {}]
  %s7 = inlined_call_operand.vmem [shape: f32[1,10], index: 7, kind: input, shape index: {}]
  %s8 = inlined_call_operand.hbm [shape: f32[2,10], index: 8, kind: output, shape index: {0}]
  %s9 = inlined_call_operand.hbm [shape: f32[2,28], index: 9, kind: output, shape index: {1}]
  %10 = xla_tuple %s8, %s9
  %s11 = sld [smem:[#allocation0]]
  $region54: #{latbuild_forward.1} parent=0
    _
  %s13 = ssub.s32 1, %s11
  %s14 = scalar_select 0, %s13, %s11
  $region1: #{latbuild_forward.1} parent=0
    #allocation2 [shape = 'u8[512]{0}', space=smem, size = 0x200, scoped, tag = 'input window, operand 0, single buffered']
    #allocation3 [shape = 's32[1]{0}', space=sflag, size = 0x4, scoped, tag = 'scoped memory for latbuild_forward.1']
    #allocation4 [shape = 's32[1]{0}', space=sflag, size = 0x4, scoped, tag = 'scoped memory for latbuild_forward.1']
    #allocation5 [shape = 'u8[1024]{0}', space=vmem, size = 0x400, scoped, tag = 'output window, operand 0, single buffered']
    #allocation6 [shape = 'u8[1024]{0}', space=vmem, size = 0x400, scoped, tag = 'output window, operand 1, single buffered']
    #allocation7 [shape = 's32[1]{0}', space=sflag, size = 0x4, scoped, tag = 'scoped memory for latbuild_forward.1']
    %15 = vsyncpa [#allocation4], 0
    %16 = vsyncpa [#allocation3], 0
    %17 = vsyncpa [#allocation7], 0
    // Predicated region
    $region2: #{latbuild_forward.1} parent=1 // pred_check
      _
    $region3: #{latbuild_forward.1} parent=1 // pred_check_branch
      %19 = sbr.rel (0) target = $region5
    $region4: #{latbuild_forward.1} parent=1 // pred_region
      %21 = vsyncadd [#allocation4], 0
      %s23 = sshll.u32 %s0, 4
      %s24 = int_to_ptr.vmem [resolvable:$true] %s23
      %26 = dma.vmem_to_smem %s24, 16, [#allocation2], [#allocation4]
    $region5: #{latbuild_forward.1} parent=1 // pred_fallthru
      _
    // Predicated region
    $region6: #{latbuild_forward.1} parent=1 // pred_check
      _
    $region7: #{latbuild_forward.1} parent=1 // pred_check_branch
      %28 = sbr.rel (0) target = $region9
    $region8: #{latbuild_forward.1} parent=1 // pred_region
      _
    $region9: #{latbuild_forward.1} parent=1 // pred_fallthru
      _
    // Predicated region
    $region10: #{latbuild_forward.1} parent=1 // pred_check
      _
    $region11: #{latbuild_forward.1} parent=1 // pred_check_branch
      %30 = sbr.rel (0) target = $region13
    $region12: #{latbuild_forward.1} parent=1 // pred_region
      _
    $region13: #{latbuild_forward.1} parent=1 // pred_fallthru
      _
    // Predicated region
    $region14: #{latbuild_forward.1} parent=1 // pred_check
      _
    $region15: #{latbuild_forward.1} parent=1 // pred_check_branch
      %32 = sbr.rel (0) target = $region17
    $region16: #{latbuild_forward.1} parent=1 // pred_region
      _
    $region17: #{latbuild_forward.1} parent=1 // pred_fallthru
      _
    // Predicated region
    $region18: #{latbuild_forward.1} parent=1 // pred_check
      _
    $region19: #{latbuild_forward.1} parent=1 // pred_check_branch
      %34 = sbr.rel (0) target = $region21
    $region20: #{latbuild_forward.1} parent=1 // pred_region
      _
    $region21: #{latbuild_forward.1} parent=1 // pred_fallthru
      _
    // Predicated region
    $region22: #{latbuild_forward.1} parent=1 // pred_check
      _
    $region23: #{latbuild_forward.1} parent=1 // pred_check_branch
      %36 = sbr.rel (0) target = $region25
    $region24: #{latbuild_forward.1} parent=1 // pred_region
      _
    $region25: #{latbuild_forward.1} parent=1 // pred_fallthru
      _
    // Predicated region
    $region26: #{latbuild_forward.1} parent=1 // pred_check
      _
    $region27: #{latbuild_forward.1} parent=1 // pred_check_branch
      %38 = sbr.rel (0) target = $region29
    $region28: #{latbuild_forward.1} parent=1 // pred_region
      _
    $region29: #{latbuild_forward.1} parent=1 // pred_fallthru
      _
    // Predicated region
    $region30: #{latbuild_forward.1} parent=1 // pred_check
      _
    $region31: #{latbuild_forward.1} parent=1 // pred_check_branch
      %40 = sbr.rel (0) target = $region33
    $region32: #{latbuild_forward.1} parent=1 // pred_region
      _
    $region33: #{latbuild_forward.1} parent=1 // pred_fallthru
      _
    // Predicated region
    $region34: #{latbuild_forward.1} parent=1 // pred_check
      _
    $region35: #{latbuild_forward.1} parent=1 // pred_check_branch
      %42 = sbr.rel (0) target = $region37
    $region36: #{latbuild_forward.1} parent=1 // pred_region
      %44 = dma.done [#allocation4], 16
    $region37: #{latbuild_forward.1} parent=1 // pred_fallthru
      _
    %45 = sfence
    %v47 = vld [vmem:[%s1] sm:$0x3]
    %v48 = vld [vmem:[%s2] sm:$0xf]
    %v49 = vld [vmem:[%s2 + $0x4] sm:$0xf]
    %v50 = vld [vmem:[%s2 + $0x8] sm:$0xf]
    %v51 = vld [vmem:[%s2 + $0xc] sm:$0xf]
    %v52 = vld [vmem:[%s2 + $0x10] sm:$0xf]
    %v53 = vld [vmem:[%s2 + $0x14] sm:$0xf]
    %v54 = vld [vmem:[%s2 + $0x18] sm:$0xf]
    %v55 = vld [vmem:[%s2 + $0x1c] sm:$0xf]
    %v56 = vld [vmem:[%s2 + $0x20] sm:$0xf]
    %v57 = vld [vmem:[%s2 + $0x24] sm:$0xf]
    %v58 = vld [vmem:[%s2 + $0x28] sm:$0x1]
    %v59 = vpack.c.bf16 %v47, %v47
    %s60 = sld [smem:[#allocation2]]
    %v61 = vstv %s60
    %v73 = vunpack.c.l.b16 %v48
    %v74 = vunpack.c.l.b16 %v49
    %v75 = vunpack.c.l.b16 %v50
    %v76 = vunpack.c.l.b16 %v51
    %v77 = vunpack.c.l.b16 %v52
    %v78 = vunpack.c.l.b16 %v53
    %v79 = vunpack.c.l.b16 %v54
    %v80 = vunpack.c.l.b16 %v55
    %v81 = vunpack.c.l.b16 %v56
    %v82 = vunpack.c.l.b16 %v57
    %v83 = vunpack.c.l.b16 %v58
    %v84 = vpack.c.b16 %v74, %v73
    %v85 = vpack.c.b16 %v76, %v75
    %v86 = vpack.c.b16 %v78, %v77
    %v87 = vpack.c.b16 %v80, %v79
    %v88 = vpack.c.b16 %v82, %v81
    %v89 = vpack.c.b16 %v83, %v83
    %vm95 = vcmask 662528
    %v97 = vsel %vm95, %v59, 0
    %vm99 = vcmask 1040384
    %v100 = vsel 0, 4294967295, 65535
    %v101 = vsel %vm99, %v100, 0
    %v103 = vand.u32 %v89, %v101
    %105 = vmatpush.bf16.msra.mxu0 0
    %106 = vmatpush.bf16.msra.mxu0 0
    %107 = vmatpush.bf16.msra.mxu0 %v103
    %108 = vmatpush.bf16.msra.mxu0 %v88
    %109 = vmatpush.bf16.msra.mxu0 %v87
    %110 = vmatpush.bf16.msra.mxu0 %v86
    %111 = vmatpush.bf16.msra.mxu0 %v85
    %112 = vmatpush.bf16.msra.mxu0 %v84
    %113 = vmatmul.bf16.gmra.mxu0 %v97
    %v114 = vpop.f32.mrf.mxu0
    %v115 = vadd.f32 %v61, %v114
    %v116 = vpop.f32.mrf.mxu0
    %117 = vdwg.mxu0
    %s118 = scalar_lea.vmem %s2, 88
    %v119 = vld [vmem:[%s118] sm:$0xf]
    %v120 = vld [vmem:[%s118 + $0x4] sm:$0xf]
    %v121 = vld [vmem:[%s118 + $0x8] sm:$0xf]
    %v122 = vld [vmem:[%s118 + $0xc] sm:$0xf]
    %v123 = vld [vmem:[%s118 + $0x10] sm:$0xf]
    %v124 = vld [vmem:[%s118 + $0x14] sm:$0xf]
    %v125 = vld [vmem:[%s118 + $0x18] sm:$0xf]
    %v126 = vld [vmem:[%s118 + $0x1c] sm:$0xf]
    %v127 = vld [vmem:[%s118 + $0x20] sm:$0xf]
    %v128 = vld [vmem:[%s118 + $0x24] sm:$0xf]
    %v129 = vld [vmem:[%s118 + $0x28] sm:$0x1]
    %s130 = sld [smem:[#allocation2 + $0x2]]
    %v131 = vstv %s130
    %v143 = vunpack.c.l.b16 %v119
    %v144 = vunpack.c.l.b16 %v120
    %v145 = vunpack.c.l.b16 %v121
    %v146 = vunpack.c.l.b16 %v122
    %v147 = vunpack.c.l.b16 %v123
    %v148 = vunpack.c.l.b16 %v124
    %v149 = vunpack.c.l.b16 %v125
    %v150 = vunpack.c.l.b16 %v126
    %v151 = vunpack.c.l.b16 %v127
    %v152 = vunpack.c.l.b16 %v128
    %v153 = vunpack.c.l.b16 %v129
    %v154 = vpack.c.b16 %v144, %v143
    %v155 = vpack.c.b16 %v146, %v145
    %v156 = vpack.c.b16 %v148, %v147
    %v157 = vpack.c.b16 %v150, %v149
    %v158 = vpack.c.b16 %v152, %v151
    %v159 = vpack.c.b16 %v153, %v153
    %v166 = vand.u32 %v159, %v101
    %168 = vmatpush.bf16.msra.mxu0 0
    %169 = vmatpush.bf16.msra.mxu0 0
    %170 = vmatpush.bf16.msra.mxu0 %v166
    %171 = vmatpush.bf16.msra.mxu0 %v158
    %172 = vmatpush.bf16.msra.mxu0 %v157
    %173 = vmatpush.bf16.msra.mxu0 %v156
    %174 = vmatpush.bf16.msra.mxu0 %v155
    %175 = vmatpush.bf16.msra.mxu0 %v154
    %176 = vmatmul.bf16.gmra.mxu0 %v97
    %v177 = vpop.f32.mrf.mxu0
    %v178 = vadd.f32 %v131, %v177
    %v179 = vpop.f32.mrf.mxu0
    %180 = vdwg.mxu0
    %v181 = vmax.f32 %v115, 0.0
    %s182 = scalar_lea.vmem %s2, 44
    %v183 = vld [vmem:[%s182] sm:$0xf]
    %v184 = vld [vmem:[%s182 + $0x4] sm:$0xf]
    %v185 = vld [vmem:[%s182 + $0x8] sm:$0xf]
    %v186 = vld [vmem:[%s182 + $0xc] sm:$0xf]
    %v187 = vld [vmem:[%s182 + $0x10] sm:$0xf]
    %v188 = vld [vmem:[%s182 + $0x14] sm:$0xf]
    %v189 = vld [vmem:[%s182 + $0x18] sm:$0xf]
    %v190 = vld [vmem:[%s182 + $0x1c] sm:$0xf]
    %v191 = vld [vmem:[%s182 + $0x20] sm:$0xf]
    %v192 = vld [vmem:[%s182 + $0x24] sm:$0xf]
    %v193 = vld [vmem:[%s182 + $0x28] sm:$0x1]
    %v194 = vpack.c.bf16 %v181, %v181
    %v206 = vunpack.c.l.b16 %v183
    %v207 = vunpack.c.l.b16 %v184
    %v208 = vunpack.c.l.b16 %v185
    %v209 = vunpack.c.l.b16 %v186
    %v210 = vunpack.c.l.b16 %v187
    %v211 = vunpack.c.l.b16 %v188
    %v212 = vunpack.c.l.b16 %v189
    %v213 = vunpack.c.l.b16 %v190
    %v214 = vunpack.c.l.b16 %v191
    %v215 = vunpack.c.l.b16 %v192
    %v216 = vunpack.c.l.b16 %v193
    %v217 = vpack.c.b16 %v207, %v206
    %v218 = vpack.c.b16 %v209, %v208
    %v219 = vpack.c.b16 %v211, %v210
    %v220 = vpack.c.b16 %v213, %v212
    %v221 = vpack.c.b16 %v215, %v214
    %v222 = vpack.c.b16 %v216, %v216
    %v229 = vsel %vm95, %v194, 0
    %v232 = vand.u32 %v222, %v101
    %234 = vmatpush.bf16.msra.mxu0 0
    %235 = vmatpush.bf16.msra.mxu0 0
    %236 = vmatpush.bf16.msra.mxu0 %v232
    %237 = vmatpush.bf16.msra.mxu0 %v221
    %238 = vmatpush.bf16.msra.mxu0 %v220
    %239 = vmatpush.bf16.msra.mxu0 %v219
    %240 = vmatpush.bf16.msra.mxu0 %v218
    %241 = vmatpush.bf16.msra.mxu0 %v217
    %242 = vmatmul.bf16.gmra.mxu0 %v229
    %v243 = vpop.f32.mrf.mxu0
    %v244 = vadd.f32 0.0, %v243
    %v245 = vpop.f32.mrf.mxu0
    %246 = vdwg.mxu0
    %vm247 = vcmask 656384
    %v248 = vsel %vm247, %v181, 0.0
    %249 = vadd.xlane.f32.xlu0 %v248
    %v250 = vpop.xlane.xlu0 %249
    %v251 = vrot.slane %v250, 4
    %v252 = vadd.f32 %v250, %v251
    %v253 = vrot.slane %v252, 2
    %v254 = vadd.f32 %v252, %v253
    %v255 = vrot.slane %v254, 1
    %v256 = vadd.f32 %v254, %v255
    %s257 = vtos %v256
    %v258 = vrcp.pop 162.0
    %v259 = vmul.f32 162.0, %v258
    %v260 = vsub.f32 1.0, %v259
    %v261 = vmul.f32 %v258, %v260
    %v262 = vadd.f32 %v258, %v261
    %vm263 = vweird.f32 %v258
    %v264 = vsel %vm263, %v258, %v262
    %s265 = vtos %v264
    %s266 = smul.f32 %s257, %s265
    %v267 = vmul.f32 %v181, %v181
    %v268 = vsel %vm247, %v267, 0.0
    %269 = vadd.xlane.f32.xlu0 %v268
    %v270 = vpop.xlane.xlu0 %269
    %v271 = vrot.slane %v270, 4
    %v272 = vadd.f32 %v270, %v271
    %v273 = vrot.slane %v272, 2
    %v274 = vadd.f32 %v272, %v273
    %v275 = vrot.slane %v274, 1
    %v276 = vadd.f32 %v274, %v275
    %s277 = vtos %v276
    %v278 = vrcp.pop 162.0
    %v279 = vmul.f32 162.0, %v278
    %v280 = vsub.f32 1.0, %v279
    %v281 = vmul.f32 %v278, %v280
    %v282 = vadd.f32 %v278, %v281
    %vm283 = vweird.f32 %v278
    %v284 = vsel %vm283, %v278, %v282
    %s285 = vtos %v284
    %s286 = smul.f32 %s277, %s285
    %s287 = smul.f32 %s266, %s266
    %s288 = ssub.f32 %s286, %s287
    %s289 = sld [smem:[#allocation2 + $0x4]]
    %s290 = sadd.f32 %s288, 1e-05
    %v291 = vstv %s290
    %v292 = vrsqrt.pop %v291
    %v293 = vmul.f32 %v292, %v291
    %v294 = vmul.f32 %v293, %v292
    %v295 = vmul.f32 0.5, %v294
    %v296 = vsub.f32 1.5, %v295
    %v297 = vmul.f32 %v292, %v296
    %vm298 = vweird.f32 %v291
    %vm299 = vweird.f32 %v292
    %vm300 = vmor %vm298, %vm299
    %v301 = vsel %vm300, %v292, %v297
    %s302 = vtos %v301
    %s303 = smul.f32 %s289, %s302
    %s304 = sld [smem:[#allocation2 + $0x9]]
    %s305 = smul.f32 %s266, %s303
    %s306 = ssub.f32 %s304, %s305
    %v307 = vstv %s303
    %v308 = vmul.f32 %v307, %v244
    %v309 = vld [vmem:[%s3 + $0x1] sm:$0x1]
    %v310 = vstv %s306
    %v311 = vmul.f32 %v310, %v309
    %s312 = sld [smem:[#allocation2 + $0x1]]
    %v313 = vstv %s312
    %v314 = vadd.f32 %v311, %v313
    %v315 = vperm.slane %v314, 0
    %v316 = vadd.f32 %v308, %v315
    %v317 = vmax.f32 %v316, 0.0
    %v318 = vpack.c.bf16 %v317, %v317
    %v320 = vsel %vm95, %v318, 0
    %322 = vmatpush.bf16.msra.mxu0 0
    %323 = vmatpush.bf16.msra.mxu0 0
    %324 = vmatpush.bf16.msra.mxu0 %v103
    %325 = vmatpush.bf16.msra.mxu0 %v88
    %326 = vmatpush.bf16.msra.mxu0 %v87
    %327 = vmatpush.bf16.msra.mxu0 %v86
    %328 = vmatpush.bf16.msra.mxu0 %v85
    %329 = vmatpush.bf16.msra.mxu0 %v84
    %330 = vmatmul.bf16.gmra.mxu0 %v320
    %v331 = vpop.f32.mrf.mxu0
    %v332 = vadd.f32 0.0, %v331
    %v333 = vpop.f32.mrf.mxu0
    %334 = vdwg.mxu0
    %v335 = vsel %vm247, %v317, 0.0
    %336 = vadd.xlane.f32.xlu0 %v335
    %v337 = vpop.xlane.xlu0 %336
    %v338 = vrot.slane %v337, 4
    %v339 = vadd.f32 %v337, %v338
    %v340 = vrot.slane %v339, 2
    %v341 = vadd.f32 %v339, %v340
    %v342 = vrot.slane %v341, 1
    %v343 = vadd.f32 %v341, %v342
    %s344 = vtos %v343
    %v345 = vrcp.pop 162.0
    %v346 = vmul.f32 162.0, %v345
    %v347 = vsub.f32 1.0, %v346
    %v348 = vmul.f32 %v345, %v347
    %v349 = vadd.f32 %v345, %v348
    %vm350 = vweird.f32 %v345
    %v351 = vsel %vm350, %v345, %v349
    %s352 = vtos %v351
    %s353 = smul.f32 %s344, %s352
    %v354 = vmul.f32 %v317, %v317
    %v355 = vsel %vm247, %v354, 0.0
    %356 = vadd.xlane.f32.xlu0 %v355
    %v357 = vpop.xlane.xlu0 %356
    %v358 = vrot.slane %v357, 4
    %v359 = vadd.f32 %v357, %v358
    %v360 = vrot.slane %v359, 2
    %v361 = vadd.f32 %v359, %v360
    %v362 = vrot.slane %v361, 1
    %v363 = vadd.f32 %v361, %v362
    %s364 = vtos %v363
    %v365 = vrcp.pop 162.0
    %v366 = vmul.f32 162.0, %v365
    %v367 = vsub.f32 1.0, %v366
    %v368 = vmul.f32 %v365, %v367
    %v369 = vadd.f32 %v365, %v368
    %vm370 = vweird.f32 %v365
    %v371 = vsel %vm370, %v365, %v369
    %s372 = vtos %v371
    %s373 = smul.f32 %s364, %s372
    %s374 = smul.f32 %s353, %s353
    %s375 = ssub.f32 %s373, %s374
    %s376 = sld [smem:[#allocation2 + $0x5]]
    %s377 = sadd.f32 %s375, 1e-05
    %v378 = vstv %s377
    %v379 = vrsqrt.pop %v378
    %v380 = vmul.f32 %v379, %v378
    %v381 = vmul.f32 %v380, %v379
    %v382 = vmul.f32 0.5, %v381
    %v383 = vsub.f32 1.5, %v382
    %v384 = vmul.f32 %v379, %v383
    %vm385 = vweird.f32 %v378
    %vm386 = vweird.f32 %v379
    %vm387 = vmor %vm385, %vm386
    %v388 = vsel %vm387, %v379, %v384
    %s389 = vtos %v388
    %s390 = smul.f32 %s376, %s389
    %s391 = sld [smem:[#allocation2 + $0xa]]
    %s392 = smul.f32 %s353, %s390
    %s393 = ssub.f32 %s391, %s392
    %v394 = vstv %s390
    %v395 = vmul.f32 %v394, %v332
    %v396 = vld [vmem:[%s3] sm:$0x1]
    %v397 = vstv %s393
    %v398 = vmul.f32 %v397, %v396
    %v399 = vperm.slane %v398, 0
    %v400 = vadd.f32 %v395, %v399
    %v401 = vadd.f32 %v400, %v115
    %v402 = vmax.f32 %v401, 0.0
    %v403 = vpack.c.bf16 %v402, %v402
    %v405 = vsel %vm95, %v403, 0
    %407 = vmatpush.bf16.msra.mxu0 0
    %408 = vmatpush.bf16.msra.mxu0 0
    %409 = vmatpush.bf16.msra.mxu0 %v232
    %410 = vmatpush.bf16.msra.mxu0 %v221
    %411 = vmatpush.bf16.msra.mxu0 %v220
    %412 = vmatpush.bf16.msra.mxu0 %v219
    %413 = vmatpush.bf16.msra.mxu0 %v218
    %414 = vmatpush.bf16.msra.mxu0 %v217
    %415 = vmatmul.bf16.gmra.mxu0 %v405
    %v416 = vpop.f32.mrf.mxu0
    %v417 = vadd.f32 0.0, %v416
    %v418 = vpop.f32.mrf.mxu0
    %419 = vdwg.mxu0
    %v420 = vsel %vm247, %v402, 0.0
    %421 = vadd.xlane.f32.xlu0 %v420
    %v422 = vpop.xlane.xlu0 %421
    %v423 = vrot.slane %v422, 4
    %v424 = vadd.f32 %v422, %v423
    %v425 = vrot.slane %v424, 2
    %v426 = vadd.f32 %v424, %v425
    %v427 = vrot.slane %v426, 1
    %v428 = vadd.f32 %v426, %v427
    %s429 = vtos %v428
    %v430 = vrcp.pop 162.0
    %v431 = vmul.f32 162.0, %v430
    %v432 = vsub.f32 1.0, %v431
    %v433 = vmul.f32 %v430, %v432
    %v434 = vadd.f32 %v430, %v433
    %vm435 = vweird.f32 %v430
    %v436 = vsel %vm435, %v430, %v434
    %s437 = vtos %v436
    %s438 = smul.f32 %s429, %s437
    %v439 = vmul.f32 %v402, %v402
    %v440 = vsel %vm247, %v439, 0.0
    %441 = vadd.xlane.f32.xlu0 %v440
    %v442 = vpop.xlane.xlu0 %441
    %v443 = vrot.slane %v442, 4
    %v444 = vadd.f32 %v442, %v443
    %v445 = vrot.slane %v444, 2
    %v446 = vadd.f32 %v444, %v445
    %v447 = vrot.slane %v446, 1
    %v448 = vadd.f32 %v446, %v447
    %s449 = vtos %v448
    %v450 = vrcp.pop 162.0
    %v451 = vmul.f32 162.0, %v450
    %v452 = vsub.f32 1.0, %v451
    %v453 = vmul.f32 %v450, %v452
    %v454 = vadd.f32 %v450, %v453
    %vm455 = vweird.f32 %v450
    %v456 = vsel %vm455, %v450, %v454
    %s457 = vtos %v456
    %s458 = smul.f32 %s449, %s457
    %s459 = smul.f32 %s438, %s438
    %s460 = ssub.f32 %s458, %s459
    %s461 = sadd.f32 %s460, 1e-05
    %v462 = vstv %s461
    %v463 = vrsqrt.pop %v462
    %v464 = vmul.f32 %v463, %v462
    %v465 = vmul.f32 %v464, %v463
    %v466 = vmul.f32 0.5, %v465
    %v467 = vsub.f32 1.5, %v466
    %v468 = vmul.f32 %v463, %v467
    %vm469 = vweird.f32 %v462
    %vm470 = vweird.f32 %v463
    %vm471 = vmor %vm469, %vm470
    %v472 = vsel %vm471, %v463, %v468
    %s473 = vtos %v472
    %s474 = smul.f32 %s289, %s473
    %s475 = smul.f32 %s438, %s474
    %s476 = ssub.f32 %s304, %s475
    %v477 = vstv %s474
    %v478 = vmul.f32 %v477, %v417
    %v479 = vstv %s476
    %v480 = vmul.f32 %v479, %v309
    %v481 = vadd.f32 %v480, %v313
    %v482 = vperm.slane %v481, 0
    %v483 = vadd.f32 %v478, %v482
    %v484 = vmax.f32 %v483, 0.0
    %v485 = vpack.c.bf16 %v484, %v484
    %v487 = vsel %vm95, %v485, 0
    %489 = vmatpush.bf16.msra.mxu0 0
    %490 = vmatpush.bf16.msra.mxu0 0
    %491 = vmatpush.bf16.msra.mxu0 %v166
    %492 = vmatpush.bf16.msra.mxu0 %v158
    %493 = vmatpush.bf16.msra.mxu0 %v157
    %494 = vmatpush.bf16.msra.mxu0 %v156
    %495 = vmatpush.bf16.msra.mxu0 %v155
    %496 = vmatpush.bf16.msra.mxu0 %v154
    %497 = vmatmul.bf16.gmra.mxu0 %v487
    %v498 = vpop.f32.mrf.mxu0
    %v499 = vadd.f32 0.0, %v498
    %v500 = vpop.f32.mrf.mxu0
    %501 = vdwg.mxu0
    %v502 = vsel %vm247, %v484, 0.0
    %503 = vadd.xlane.f32.xlu0 %v502
    %v504 = vpop.xlane.xlu0 %503
    %v505 = vrot.slane %v504, 4
    %v506 = vadd.f32 %v504, %v505
    %v507 = vrot.slane %v506, 2
    %v508 = vadd.f32 %v506, %v507
    %v509 = vrot.slane %v508, 1
    %v510 = vadd.f32 %v508, %v509
    %s511 = vtos %v510
    %v512 = vrcp.pop 162.0
    %v513 = vmul.f32 162.0, %v512
    %v514 = vsub.f32 1.0, %v513
    %v515 = vmul.f32 %v512, %v514
    %v516 = vadd.f32 %v512, %v515
    %vm517 = vweird.f32 %v512
    %v518 = vsel %vm517, %v512, %v516
    %s519 = vtos %v518
    %s520 = smul.f32 %s511, %s519
    %v521 = vmul.f32 %v484, %v484
    %v522 = vsel %vm247, %v521, 0.0
    %523 = vadd.xlane.f32.xlu0 %v522
    %v524 = vpop.xlane.xlu0 %523
    %v525 = vrot.slane %v524, 4
    %v526 = vadd.f32 %v524, %v525
    %v527 = vrot.slane %v526, 2
    %v528 = vadd.f32 %v526, %v527
    %v529 = vrot.slane %v528, 1
    %v530 = vadd.f32 %v528, %v529
    %s531 = vtos %v530
    %v532 = vrcp.pop 162.0
    %v533 = vmul.f32 162.0, %v532
    %v534 = vsub.f32 1.0, %v533
    %v535 = vmul.f32 %v532, %v534
    %v536 = vadd.f32 %v532, %v535
    %vm537 = vweird.f32 %v532
    %v538 = vsel %vm537, %v532, %v536
    %s539 = vtos %v538
    %s540 = smul.f32 %s531, %s539
    %s541 = smul.f32 %s520, %s520
    %s542 = ssub.f32 %s540, %s541
    %s543 = sadd.f32 %s542, 1e-05
    %v544 = vstv %s543
    %v545 = vrsqrt.pop %v544
    %v546 = vmul.f32 %v545, %v544
    %v547 = vmul.f32 %v546, %v545
    %v548 = vmul.f32 0.5, %v547
    %v549 = vsub.f32 1.5, %v548
    %v550 = vmul.f32 %v545, %v549
    %vm551 = vweird.f32 %v544
    %vm552 = vweird.f32 %v545
    %vm553 = vmor %vm551, %vm552
    %v554 = vsel %vm553, %v545, %v550
    %s555 = vtos %v554
    %s556 = smul.f32 %s376, %s555
    %s557 = smul.f32 %s520, %s556
    %s558 = ssub.f32 %s391, %s557
    %v559 = vstv %s556
    %v560 = vmul.f32 %v559, %v499
    %v561 = vld [vmem:[%s3 + $0x2] sm:$0x1]
    %v562 = vstv %s558
    %v563 = vmul.f32 %v562, %v561
    %v564 = vperm.slane %v563, 0
    %v565 = vadd.f32 %v560, %v564
    %v566 = vadd.f32 %v565, %v178
    %v567 = vmax.f32 %v566, 0.0
    %s568 = scalar_lea.vmem %s2, 132
    %v569 = vld [vmem:[%s568] sm:$0xf]
    %v570 = vld [vmem:[%s568 + $0x4] sm:$0xf]
    %v571 = vld [vmem:[%s568 + $0x8] sm:$0xf]
    %v572 = vld [vmem:[%s568 + $0xc] sm:$0xf]
    %v573 = vld [vmem:[%s568 + $0x10] sm:$0xf]
    %v574 = vld [vmem:[%s568 + $0x14] sm:$0xf]
    %v575 = vld [vmem:[%s568 + $0x18] sm:$0xf]
    %v576 = vld [vmem:[%s568 + $0x1c] sm:$0xf]
    %v577 = vld [vmem:[%s568 + $0x20] sm:$0xf]
    %v578 = vld [vmem:[%s568 + $0x24] sm:$0xf]
    %v579 = vld [vmem:[%s568 + $0x28] sm:$0x1]
    %v580 = vpack.c.bf16 %v567, %v567
    %v592 = vunpack.c.l.b16 %v569
    %v593 = vunpack.c.l.b16 %v570
    %v594 = vunpack.c.l.b16 %v571
    %v595 = vunpack.c.l.b16 %v572
    %v596 = vunpack.c.l.b16 %v573
    %v597 = vunpack.c.l.b16 %v574
    %v598 = vunpack.c.l.b16 %v575
    %v599 = vunpack.c.l.b16 %v576
    %v600 = vunpack.c.l.b16 %v577
    %v601 = vunpack.c.l.b16 %v578
    %v602 = vunpack.c.l.b16 %v579
    %v603 = vpack.c.b16 %v593, %v592
    %v604 = vpack.c.b16 %v595, %v594
    %v605 = vpack.c.b16 %v597, %v596
    %v606 = vpack.c.b16 %v599, %v598
    %v607 = vpack.c.b16 %v601, %v600
    %v608 = vpack.c.b16 %v602, %v602
    %v615 = vsel %vm95, %v580, 0
    %v618 = vand.u32 %v608, %v101
    %620 = vmatpush.bf16.msra.mxu0 0
    %621 = vmatpush.bf16.msra.mxu0 0
    %622 = vmatpush.bf16.msra.mxu0 %v618
    %623 = vmatpush.bf16.msra.mxu0 %v607
    %624 = vmatpush.bf16.msra.mxu0 %v606
    %625 = vmatpush.bf16.msra.mxu0 %v605
    %626 = vmatpush.bf16.msra.mxu0 %v604
    %627 = vmatpush.bf16.msra.mxu0 %v603
    %628 = vmatmul.bf16.gmra.mxu0 %v615
    %v629 = vpop.f32.mrf.mxu0
    %v630 = vadd.f32 0.0, %v629
    %v631 = vpop.f32.mrf.mxu0
    %632 = vdwg.mxu0
    %v633 = vsel %vm247, %v567, 0.0
    %634 = vadd.xlane.f32.xlu0 %v633
    %v635 = vpop.xlane.xlu0 %634
    %v636 = vrot.slane %v635, 4
    %v637 = vadd.f32 %v635, %v636
    %v638 = vrot.slane %v637, 2
    %v639 = vadd.f32 %v637, %v638
    %v640 = vrot.slane %v639, 1
    %v641 = vadd.f32 %v639, %v640
    %s642 = vtos %v641
    %v643 = vrcp.pop 162.0
    %v644 = vmul.f32 162.0, %v643
    %v645 = vsub.f32 1.0, %v644
    %v646 = vmul.f32 %v643, %v645
    %v647 = vadd.f32 %v643, %v646
    %vm648 = vweird.f32 %v643
    %v649 = vsel %vm648, %v643, %v647
    %s650 = vtos %v649
    %s651 = smul.f32 %s642, %s650
    %v652 = vmul.f32 %v567, %v567
    %v653 = vsel %vm247, %v652, 0.0
    %654 = vadd.xlane.f32.xlu0 %v653
    %v655 = vpop.xlane.xlu0 %654
    %v656 = vrot.slane %v655, 4
    %v657 = vadd.f32 %v655, %v656
    %v658 = vrot.slane %v657, 2
    %v659 = vadd.f32 %v657, %v658
    %v660 = vrot.slane %v659, 1
    %v661 = vadd.f32 %v659, %v660
    %s662 = vtos %v661
    %v663 = vrcp.pop 162.0
    %v664 = vmul.f32 162.0, %v663
    %v665 = vsub.f32 1.0, %v664
    %v666 = vmul.f32 %v663, %v665
    %v667 = vadd.f32 %v663, %v666
    %vm668 = vweird.f32 %v663
    %v669 = vsel %vm668, %v663, %v667
    %s670 = vtos %v669
    %s671 = smul.f32 %s662, %s670
    %s672 = smul.f32 %s651, %s651
    %s673 = ssub.f32 %s671, %s672
    %s674 = sld [smem:[#allocation2 + $0x6]]
    %s675 = sadd.f32 %s673, 1e-05
    %v676 = vstv %s675
    %v677 = vrsqrt.pop %v676
    %v678 = vmul.f32 %v677, %v676
    %v679 = vmul.f32 %v678, %v677
    %v680 = vmul.f32 0.5, %v679
    %v681 = vsub.f32 1.5, %v680
    %v682 = vmul.f32 %v677, %v681
    %vm683 = vweird.f32 %v676
    %vm684 = vweird.f32 %v677
    %vm685 = vmor %vm683, %vm684
    %v686 = vsel %vm685, %v677, %v682
    %s687 = vtos %v686
    %s688 = smul.f32 %s674, %s687
    %s689 = sld [smem:[#allocation2 + $0xb]]
    %s690 = smul.f32 %s651, %s688
    %s691 = ssub.f32 %s689, %s690
    %v692 = vstv %s688
    %v693 = vmul.f32 %v692, %v630
    %v694 = vld [vmem:[%s3 + $0x3] sm:$0x1]
    %v695 = vstv %s691
    %v696 = vmul.f32 %v695, %v694
    %s697 = sld [smem:[#allocation2 + $0x3]]
    %v698 = vstv %s697
    %v699 = vadd.f32 %v696, %v698
    %v700 = vperm.slane %v699, 0
    %v701 = vadd.f32 %v693, %v700
    %v702 = vmax.f32 %v701, 0.0
    %v703 = vsel %vm247, %v702, 0.0
    %704 = vadd.xlane.f32.xlu0 %v703
    %v705 = vpop.xlane.xlu0 %704
    %v706 = vrot.slane %v705, 4
    %v707 = vadd.f32 %v705, %v706
    %v708 = vrot.slane %v707, 2
    %v709 = vadd.f32 %v707, %v708
    %v710 = vrot.slane %v709, 1
    %v711 = vadd.f32 %v709, %v710
    %s712 = vtos %v711
    %v713 = vrcp.pop 162.0
    %v714 = vmul.f32 162.0, %v713
    %v715 = vsub.f32 1.0, %v714
    %v716 = vmul.f32 %v713, %v715
    %v717 = vadd.f32 %v713, %v716
    %vm718 = vweird.f32 %v713
    %v719 = vsel %vm718, %v713, %v717
    %s720 = vtos %v719
    %s721 = smul.f32 %s712, %s720
    %v722 = vmul.f32 %v702, %v702
    %v723 = vsel %vm247, %v722, 0.0
    %724 = vadd.xlane.f32.xlu0 %v723
    %v725 = vpop.xlane.xlu0 %724
    %v726 = vrot.slane %v725, 4
    %v727 = vadd.f32 %v725, %v726
    %v728 = vrot.slane %v727, 2
    %v729 = vadd.f32 %v727, %v728
    %v730 = vrot.slane %v729, 1
    %v731 = vadd.f32 %v729, %v730
    %s732 = vtos %v731
    %v733 = vrcp.pop 162.0
    %v734 = vmul.f32 162.0, %v733
    %v735 = vsub.f32 1.0, %v734
    %v736 = vmul.f32 %v733, %v735
    %v737 = vadd.f32 %v733, %v736
    %vm738 = vweird.f32 %v733
    %v739 = vsel %vm738, %v733, %v737
    %s740 = vtos %v739
    %s741 = smul.f32 %s732, %s740
    %s742 = smul.f32 %s721, %s721
    %s743 = ssub.f32 %s741, %s742
    %s744 = sld [smem:[#allocation2 + $0x7]]
    %s745 = sadd.f32 %s743, 1e-05
    %v746 = vstv %s745
    %v747 = vrsqrt.pop %v746
    %v748 = vmul.f32 %v747, %v746
    %v749 = vmul.f32 %v748, %v747
    %v750 = vmul.f32 0.5, %v749
    %v751 = vsub.f32 1.5, %v750
    %v752 = vmul.f32 %v747, %v751
    %vm753 = vweird.f32 %v746
    %vm754 = vweird.f32 %v747
    %vm755 = vmor %vm753, %vm754
    %v756 = vsel %vm755, %v747, %v752
    %s757 = vtos %v756
    %s758 = smul.f32 %s744, %s757
    %s759 = sld [smem:[#allocation2 + $0xc]]
    %s760 = smul.f32 %s721, %s758
    %s761 = ssub.f32 %s759, %s760
    %v762 = vstv %s758
    %v763 = vmul.f32 %v762, %v702
    %v764 = vstv %s761
    %v765 = vadd.f32 %v763, %v764
    %v766 = vadd.f32 %v765, %v47
    %v767 = vmax.f32 %v766, 0.0
    %v768 = vld [vmem:[%s4] sm:$0xf]
    %v769 = vld [vmem:[%s4 + $0x4] sm:$0xf]
    %v770 = vld [vmem:[%s4 + $0x8] sm:$0xf]
    %v771 = vld [vmem:[%s4 + $0xc] sm:$0xf]
    %v772 = vld [vmem:[%s4 + $0x10] sm:$0xf]
    %v773 = vld [vmem:[%s4 + $0x14] sm:$0xf]
    %v774 = vld [vmem:[%s4 + $0x18] sm:$0xf]
    %v775 = vld [vmem:[%s4 + $0x1c] sm:$0xf]
    %v776 = vld [vmem:[%s4 + $0x20] sm:$0xf]
    %v777 = vld [vmem:[%s4 + $0x24] sm:$0xf]
    %v778 = vld [vmem:[%s4 + $0x28] sm:$0x1]
    %v779 = vpack.c.bf16 %v767, %v767
    %v791 = vunpack.c.l.b16 %v768
    %v792 = vunpack.c.l.b16 %v769
    %v793 = vunpack.c.l.b16 %v770
    %v794 = vunpack.c.l.b16 %v771
    %v795 = vunpack.c.l.b16 %v772
    %v796 = vunpack.c.l.b16 %v773
    %v797 = vunpack.c.l.b16 %v774
    %v798 = vunpack.c.l.b16 %v775
    %v799 = vunpack.c.l.b16 %v776
    %v800 = vunpack.c.l.b16 %v777
    %v801 = vunpack.c.l.b16 %v778
    %v802 = vpack.c.b16 %v792, %v791
    %v803 = vpack.c.b16 %v794, %v793
    %v804 = vpack.c.b16 %v796, %v795
    %v805 = vpack.c.b16 %v798, %v797
    %v806 = vpack.c.b16 %v800, %v799
    %v807 = vpack.c.b16 %v801, %v801
    %v814 = vsel %vm95, %v779, 0
    %v817 = vand.u32 %v807, %v101
    %819 = vmatpush.bf16.msra.mxu0 0
    %820 = vmatpush.bf16.msra.mxu0 0
    %821 = vmatpush.bf16.msra.mxu0 %v817
    %822 = vmatpush.bf16.msra.mxu0 %v806
    %823 = vmatpush.bf16.msra.mxu0 %v805
    %824 = vmatpush.bf16.msra.mxu0 %v804
    %825 = vmatpush.bf16.msra.mxu0 %v803
    %826 = vmatpush.bf16.msra.mxu0 %v802
    %827 = vmatmul.bf16.gmra.mxu0 %v814
    %v828 = vpop.f32.mrf.mxu0
    %v829 = vadd.f32 0.0, %v828
    %v830 = vpop.f32.mrf.mxu0
    %831 = vdwg.mxu0
    %v832 = vsel %vm247, %v767, 0.0
    %833 = vadd.xlane.f32.xlu0 %v832
    %v834 = vpop.xlane.xlu0 %833
    %v835 = vrot.slane %v834, 4
    %v836 = vadd.f32 %v834, %v835
    %v837 = vrot.slane %v836, 2
    %v838 = vadd.f32 %v836, %v837
    %v839 = vrot.slane %v838, 1
    %v840 = vadd.f32 %v838, %v839
    %s841 = vtos %v840
    %v842 = vrcp.pop 162.0
    %v843 = vmul.f32 162.0, %v842
    %v844 = vsub.f32 1.0, %v843
    %v845 = vmul.f32 %v842, %v844
    %v846 = vadd.f32 %v842, %v845
    %vm847 = vweird.f32 %v842
    %v848 = vsel %vm847, %v842, %v846
    %s849 = vtos %v848
    %s850 = smul.f32 %s841, %s849
    %v851 = vmul.f32 %v767, %v767
    %v852 = vsel %vm247, %v851, 0.0
    %853 = vadd.xlane.f32.xlu0 %v852
    %v854 = vpop.xlane.xlu0 %853
    %v855 = vrot.slane %v854, 4
    %v856 = vadd.f32 %v854, %v855
    %v857 = vrot.slane %v856, 2
    %v858 = vadd.f32 %v856, %v857
    %v859 = vrot.slane %v858, 1
    %v860 = vadd.f32 %v858, %v859
    %s861 = vtos %v860
    %v862 = vrcp.pop 162.0
    %v863 = vmul.f32 162.0, %v862
    %v864 = vsub.f32 1.0, %v863
    %v865 = vmul.f32 %v862, %v864
    %v866 = vadd.f32 %v862, %v865
    %vm867 = vweird.f32 %v862
    %v868 = vsel %vm867, %v862, %v866
    %s869 = vtos %v868
    %s870 = smul.f32 %s861, %s869
    %s871 = smul.f32 %s850, %s850
    %s872 = ssub.f32 %s870, %s871
    %s873 = sld [smem:[#allocation2 + $0x8]]
    %s874 = sadd.f32 %s872, 1e-05
    %v875 = vstv %s874
    %v876 = vrsqrt.pop %v875
    %v877 = vmul.f32 %v876, %v875
    %v878 = vmul.f32 %v877, %v876
    %v879 = vmul.f32 0.5, %v878
    %v880 = vsub.f32 1.5, %v879
    %v881 = vmul.f32 %v876, %v880
    %vm882 = vweird.f32 %v875
    %vm883 = vweird.f32 %v876
    %vm884 = vmor %vm882, %vm883
    %v885 = vsel %vm884, %v876, %v881
    %s886 = vtos %v885
    %s887 = smul.f32 %s873, %s886
    %s888 = sld [smem:[#allocation2 + $0xd]]
    %s889 = smul.f32 %s850, %s887
    %s890 = ssub.f32 %s888, %s889
    %v891 = vstv %s887
    %v892 = vmul.f32 %v891, %v829
    %v893 = vld [vmem:[%s5 + $0x1] sm:$0x1]
    %v894 = vstv %s890
    %v895 = vmul.f32 %v894, %v893
    %v896 = vld [vmem:[%s5] sm:$0x1]
    %v897 = vadd.f32 %v895, %v896
    %v898 = vperm.slane %v897, 0
    %v899 = vadd.f32 %v892, %v898
    %v900 = vmax.f32 %v899, 0.0
    %vm901 = vcmask 222208
    %902 = vst.msk [vmem:[#allocation6] sm:$0x3] %vm901, %v900
    %v903 = vld [vmem:[%s6] sm:$0xf]
    %v904 = vld [vmem:[%s6 + $0x4] sm:$0xf]
    %v905 = vld [vmem:[%s6 + $0x8] sm:$0xf]
    %v906 = vld [vmem:[%s6 + $0xc] sm:$0x3]
    %v907 = vpack.c.bf16 %v900, %v900
    %v908 = vld [vmem:[%s7] sm:$0x1]
    %v910 = vperm.slane %v908, 0
    %v916 = vunpack.c.l.b16 %v903
    %v917 = vunpack.c.l.b16 %v904
    %v918 = vunpack.c.l.b16 %v905
    %v919 = vunpack.c.l.b16 %v906
    %v920 = vpack.c.b16 %v917, %v916
    %v921 = vpack.c.b16 %v919, %v918
    %vm923 = vcmask 228352
    %v925 = vsel %vm923, %v907, 0
    %vm927 = vcmask 1045504
    %v929 = vsel %vm927, %v921, 0
    %931 = vmatpush.bf16.msra.mxu0 0
    %932 = vmatpush.bf16.msra.mxu0 0
    %933 = vmatpush.bf16.msra.mxu0 0
    %934 = vmatpush.bf16.msra.mxu0 0
    %935 = vmatpush.bf16.msra.mxu0 0
    %936 = vmatpush.bf16.msra.mxu0 0
    %937 = vmatpush.bf16.msra.mxu0 %v929
    %938 = vmatpush.bf16.msra.mxu0 %v920
    %939 = vmatmul.bf16.gmra.mxu0 %v925
    %v940 = vpop.f32.mrf.mxu0
    %v941 = vadd.f32 %v910, %v940
    %v942 = vpop.f32.mrf.mxu0
    %943 = vdwg.mxu0
    %vm944 = vcmask 74752
    %v945 = vsel %vm944, %v941, -inf
    %v946 = vrot.slane %v945, 4
    %v947 = vmax.f32 %v945, %v946
    %v948 = vrot.slane %v947, 2
    %v949 = vmax.f32 %v947, %v948
    %v950 = vrot.slane %v949, 1
    %v951 = vmax.f32 %v949, %v950
    %v952 = vsub.f32 %v941, %v951
    %v953 = vmul.f32 %v952, 1.442695
    %v954 = vpow.pop %v953
    %v955 = vsel %vm944, %v954, 0.0
    %v956 = vrot.slane %v955, 4
    %v957 = vadd.f32 %v955, %v956
    %v958 = vrot.slane %v957, 2
    %v959 = vadd.f32 %v957, %v958
    %v960 = vrot.slane %v959, 1
    %v961 = vadd.f32 %v959, %v960
    %v962 = vrcp.pop %v961
    %v963 = vmul.f32 %v954, %v962
    %964 = vst.msk [vmem:[#allocation5] sm:$0x3] %vm944, %v963
    // Predicated region
    $region38: #{latbuild_forward.1} parent=1 // pred_check
      _
    $region39: #{latbuild_forward.1} parent=1 // pred_check_branch
      %966 = sbr.rel (0) target = $region41
    $region40: #{latbuild_forward.1} parent=1 // pred_region
      %968 = vsyncadd [#allocation3], 0
      %s970 = sshll.u32 [#allocation5], 4
      %s971 = int_to_ptr.vmem [resolvable:$true] %s970
      %s972 = sshll.u32 %s8, 4
      %s973 = int_to_ptr.hbm [resolvable:$true] %s972
      %975 = dma.vmem_to_hbm [thread:$0]  %s971, 32, %s973, [#allocation3]
    $region41: #{latbuild_forward.1} parent=1 // pred_fallthru
      _
    // Predicated region
    $region42: #{latbuild_forward.1} parent=1 // pred_check
      _
    $region43: #{latbuild_forward.1} parent=1 // pred_check_branch
      %977 = sbr.rel (0) target = $region45
    $region44: #{latbuild_forward.1} parent=1 // pred_region
      %979 = vsyncadd [#allocation7], 0
      %s981 = sshll.u32 [#allocation6], 4
      %s982 = int_to_ptr.vmem [resolvable:$true] %s981
      %s983 = sshll.u32 %s9, 4
      %s984 = int_to_ptr.hbm [resolvable:$true] %s983
      %986 = dma.vmem_to_hbm [thread:$0]  %s982, 32, %s984, [#allocation7]
    $region45: #{latbuild_forward.1} parent=1 // pred_fallthru
      _
    // Predicated region
    $region46: #{latbuild_forward.1} parent=1 // pred_check
      _
    $region47: #{latbuild_forward.1} parent=1 // pred_check_branch
      %988 = sbr.rel (0) target = $region49
    $region48: #{latbuild_forward.1} parent=1 // pred_region
      %990 = dma.done [#allocation3], 32
    $region49: #{latbuild_forward.1} parent=1 // pred_fallthru
      _
    // Predicated region
    $region50: #{latbuild_forward.1} parent=1 // pred_check
      _
    $region51: #{latbuild_forward.1} parent=1 // pred_check_branch
      %992 = sbr.rel (0) target = $region53
    $region52: #{latbuild_forward.1} parent=1 // pred_region
      %994 = dma.done [#allocation7], 32
    $region53: #{latbuild_forward.1} parent=1 // pred_fallthru
      _
    %995 = vsyncpa [#allocation3], 1
    %996 = vsyncpa [#allocation7], 1
    %997 = vsyncpa [#allocation4], 1

</llo_original>
